<compile_context>
chip_gen: v7x
topology: tpu7x:2x2x1
jax: 0.10.0
libtpu: 0.0.40
codegen_flags: <defaults>
</compile_context>

<pallas_src>
import functools

import jax
import jax.numpy as jnp
from jax import lax
from jax.experimental import pallas as pl
from jax.experimental.pallas import tpu as pltpu

_LANE = 128          # lane width (hidden-tile granularity)
_SUBLANE = 8         # sublane width (batch padding granularity)
_MAX_TILE = 512      # widest hidden tile we will request
_HEADROOM = 2 * 1024 * 1024
_F32 = 4


def _round_up(x, m):
    return (x + m - 1) // m * m


def _indrnn_layer_kernel(x_ref, w_ref, p_ref, out_ref, h_ref, buf_ref, *, batch):
    """One IndRNN layer for one hidden tile.

    x_ref  : (T*B_pad, D_in)   time-major, batch-padded input slab
    w_ref  : (D_in, H_tile)    pre-transposed input-mapping weight tile
    p_ref  : (4, H_tile)       rows = [b_in, w_hh, gamma, beta]
    out_ref: (T*B_pad, H_tile) normalized layer output (written once)
    h_ref  : (B_pad, H_tile)   final hidden state
    buf_ref: (T*B_pad, H_tile) f32 scratch staging mapped pre-activations / h_t
    """
    tbp, h_tile = out_ref.shape
    b_pad = h_ref.shape[0]
    time_len = tbp // b_pad

    b_in = p_ref[0:1, :]     # (1, H_tile)
    w_hh = p_ref[1:2, :]
    gamma = p_ref[2:3, :]
    beta = p_ref[3:4, :]

    # ---- Input mapping: canonical 2-D MXU matmul, staged once in f32 scratch ----
    mapped = jnp.dot(x_ref[...], w_ref[...], preferred_element_type=jnp.float32)
    if batch == b_pad:
        biased = mapped + b_in
    else:
        # Mask the bias once for padded batch rows.  Padded rows of x are already
        # zero, so with a zero bias their hidden state stays exactly 0 for every
        # timestep — no per-step masking on the serial critical path, and the
        # fused BatchNorm statistics need no masking either.
        row_ids = lax.broadcasted_iota(jnp.int32, (tbp, 1), 0)
        real_row = (row_ids % b_pad) < batch
        biased = mapped + jnp.where(real_row, b_in, 0.0)
    buf_ref[...] = biased

    # ---- Sequential IndRNN recurrence ----
    # Per-step work is pure VALU: h update + elementwise BN accumulators.  The
    # cross-sublane (XLU) reductions are hoisted out of the loop and done once.
    def step(t, carry):
        h, s_acc, ss_acc = carry
        r0 = pl.multiple_of(t * b_pad, b_pad)            # aligned 8-sublane slice
        m_t = buf_ref[pl.ds(r0, b_pad), :]               # (B_pad, H_tile)
        h_new = jnp.maximum(m_t + w_hh * h, 0.0)
        buf_ref[pl.ds(r0, b_pad), :] = h_new
        return h_new, s_acc + h_new, ss_acc + h_new * h_new

    zeros = jnp.zeros((b_pad, h_tile), jnp.float32)
    unroll = min(time_len, 8 if h_tile <= 256 else 4)    # cap vreg pressure on wide tiles
    h_fin, s_acc, ss_acc = lax.fori_loop(
        0, time_len, step, (zeros, zeros, zeros), unroll=unroll)

    h_ref[...] = h_fin.astype(h_ref.dtype)

    # ---- Training-mode BatchNorm1d: per-channel stats over the T*batch real rows,
    #      biased variance, eps=1e-4; single normalized store to out_ref ----
    s = jnp.sum(s_acc, axis=0, keepdims=True)            # one XLU reduce, amortized over T
    ss = jnp.sum(ss_acc, axis=0, keepdims=True)
    inv_n = 1.0 / float(time_len * batch)
    mean = s * inv_n
    var = jnp.maximum(ss * inv_n - mean * mean, 0.0)     # one-pass var can cancel negative
    scale = gamma * lax.rsqrt(var + 1e-4)
    shift = beta - mean * scale
    out_ref[...] = (buf_ref[...] * scale + shift).astype(out_ref.dtype)


def _layer_vmem_bytes(tbp, din, b_pad, h_tile):
    """Exact per-grid-step VMEM footprint (f32), including (8,128) layout padding."""
    din_lane = _round_up(din, _LANE)       # x block: last dim padded to lanes
    din_sub = _round_up(din, _SUBLANE)     # w block: second-to-last dim padded to sublanes
    x_b = 1 * tbp * din_lane * _F32        # pl.Buffered(1): single resident copy
    w_b = 2 * din_sub * h_tile * _F32      # double-buffered weight tile
    p_b = 2 * _SUBLANE * h_tile * _F32     # packed [b_in, w_hh, gamma, beta] (padded to 8 rows)
    out_b = 2 * tbp * h_tile * _F32        # normalized output tile
    h_b = 2 * b_pad * h_tile * _F32        # final hidden tile
    scr_b = tbp * h_tile * _F32            # f32 staging scratch
    return x_b + w_b + p_b + out_b + h_b + scr_b


def _pick_tile_and_vmem(tbp, din, b_pad, h_pad):
    """Pick the hidden tile width and an exact vmem_limit for this layer."""
    try:
        info = pltpu.get_tpu_info()
        phys = int(getattr(info, "vmem_capacity_bytes", 64 * 1024 * 1024))
    except Exception:  # conservative: assume v7x's 64 MiB per-TC VMEM
        phys = 64 * 1024 * 1024
    cap = max(phys - 8 * 1024 * 1024, 16 * 1024 * 1024)   # compiler/runtime headroom

    cands = [t for t in range(_LANE, min(_MAX_TILE, h_pad) + 1, _LANE)
             if h_pad % t == 0]
    # Prefer >= 2 grid steps so dimension_semantics=("parallel",) can shard the
    # hidden tiles across v7x's two TensorCores; among those, take the widest tile.
    multi = [t for t in cands if h_pad // t >= 2]
    ordered = sorted(multi, reverse=True) + sorted(set(cands) - set(multi), reverse=True)
    for h_tile in ordered:
        need = _layer_vmem_bytes(tbp, din, b_pad, h_tile) + _HEADROOM
        if need <= cap:
            return h_tile, int(min(max(need, 16 * 1024 * 1024), cap))
    # TODO(synk): if even H_tile=128 does not fit (huge T*D_in slab), move x to
    #             memory_space=pl.ANY and manually pipeline time-chunk DMAs.
    return min(cands), int(cap)


def _run_layer(x2d, w_t, packed, *, batch, b_pad):
    """x2d: (T*B_pad, D_in) -> (out (T*B_pad, H_pad), h_n (B_pad, H_pad))."""
    tbp, din = x2d.shape
    h_pad = w_t.shape[1]
    h_tile, vmem_limit = _pick_tile_and_vmem(tbp, din, b_pad, h_pad)
    n_tiles = h_pad // h_tile

    kernel = functools.partial(_indrnn_layer_kernel, batch=batch)

    return pl.pallas_call(
        kernel,
        out_shape=(jax.ShapeDtypeStruct((tbp, h_pad), x2d.dtype),
                   jax.ShapeDtypeStruct((b_pad, h_pad), x2d.dtype)),
        grid=(n_tiles,),
        in_specs=[
            # x slab is the same block for every hidden tile -> single buffer.
            pl.BlockSpec((tbp, din), lambda j: (0, 0),
                         pipeline_mode=pl.Buffered(1)),
            pl.BlockSpec((din, h_tile), lambda j: (0, j)),    # W^T hidden tile
            pl.BlockSpec((4, h_tile), lambda j: (0, j)),      # packed [b, w_hh, gamma, beta]
        ],
        out_specs=(
            pl.BlockSpec((tbp, h_tile), lambda j: (0, j)),
            pl.BlockSpec((b_pad, h_tile), lambda j: (0, j)),
        ),
        scratch_shapes=[pltpu.VMEM((tbp, h_tile), jnp.float32)],
        compiler_params=pltpu.CompilerParams(
            dimension_semantics=("parallel",),
            vmem_limit_bytes=vmem_limit),
    )(x2d, w_t, packed)


@functools.partial(jax.jit, static_argnames=("hidden_sizes",))
def basic_indrnn_forward(x, layer_arrays, hidden_sizes):
    """x: (B, T, input_size) -> (output (B, T, H), h_n (num_layers, B, H))."""
    batch, time_len, _ = x.shape
    b_pad = _round_up(max(batch, 1), _SUBLANE)

    # One small layout pass on the raw input (features only): time-major,
    # batch-padded, flattened to a lane/sublane-friendly 2-D slab.  All layers
    # stay in this layout — no per-layer HBM transposes.
    x_tm = jnp.transpose(x, (1, 0, 2))                              # (T, B, Din)
    x_tm = jnp.pad(x_tm, ((0, 0), (0, b_pad - batch), (0, 0)))
    cur = x_tm.reshape(time_len * b_pad, x.shape[2])

    hiddens = []
    for (w_t, packed), hidden in zip(layer_arrays, hidden_sizes):
        cur, h_last = _run_layer(cur, w_t, packed, batch=batch, b_pad=b_pad)
        hiddens.append(h_last[:batch, :hidden])

    hidden = hidden_sizes[-1]
    out = cur.reshape(time_len, b_pad, -1)[:, :batch, :hidden]
    output = jnp.transpose(out, (1, 0, 2))                          # (B, T, H)
    return output, jnp.stack(hiddens, 0)


def init_params(key, input_size, hidden_size, num_layer=1, hidden_max_abs=2.0):
    """Synthetic init mirroring the module's __init__:
       InputMapping: weight ~ U(-0.001, 0.001) (init_ih='uniform/-0.001/0.001'), bias = 0;
       w_hh clipped to [-hidden_max_abs, hidden_max_abs]; BatchNorm affine = (1, 0)."""
    params = []
    in_size = input_size
    for _ in range(num_layer):
        key, k1, k2 = jax.random.split(key, 3)
        w_in = jax.random.uniform(k1, (hidden_size, in_size), jnp.float32,
                                  minval=-0.001, maxval=0.001)
        b_in = jnp.zeros((hidden_size,), jnp.float32)
        w_hh = jax.random.uniform(k2, (hidden_size,), jnp.float32,
                                  minval=-1.0, maxval=1.0)
        w_hh = jnp.clip(w_hh, -hidden_max_abs, hidden_max_abs)
        gamma = jnp.ones((hidden_size,), jnp.float32)
        beta = jnp.zeros((hidden_size,), jnp.float32)
        params.append(dict(w_in=w_in, b_in=b_in, w_hh=w_hh, gamma=gamma, beta=beta))
        in_size = hidden_size
    return params


def prep_params(raw_params, input_size):
    """One-time (outside the hot path) weight prep: pre-transpose W_in, zero-pad the
       hidden axis to a multiple of 128 (and the input axis to the previous layer's
       padded width), and pack (b_in, w_hh, gamma, beta) into a single (4, H_pad)."""
    layer_arrays = []
    hidden_sizes = []
    prev_real, prev_pad = input_size, input_size
    for p in raw_params:
        hidden, in_real = p["w_in"].shape
        assert in_real == prev_real
        h_padded = _round_up(hidden, _LANE)
        w_t = jnp.zeros((prev_pad, h_padded), jnp.float32)
        w_t = w_t.at[:prev_real, :hidden].set(jnp.transpose(p["w_in"]))

        def pad1(v, h=hidden, hp=h_padded):
            return jnp.zeros((hp,), jnp.float32).at[:h].set(v.reshape(-1))

        packed = jnp.stack([pad1(p["b_in"]), pad1(p["w_hh"]),
                            pad1(p["gamma"]), pad1(p["beta"])], axis=0)
        layer_arrays.append((w_t, packed))
        hidden_sizes.append(int(hidden))
        prev_real, prev_pad = hidden, h_padded
    return tuple(layer_arrays), tuple(hidden_sizes)


def _reference_forward(x, raw_params):
    """Pure-JAX reference of the PyTorch module forward (default config)."""
    out = x
    hiddens = []
    for p in raw_params:
        mapped = out @ jnp.transpose(p["w_in"]) + p["b_in"]          # (B, T, H)
        bsz, tlen, hid = mapped.shape
        h = jnp.zeros((bsz, hid), jnp.float32)
        ys = []
        for t in range(tlen):
            h = jax.nn.relu(mapped[:, t, :] + p["w_hh"] * h)
            ys.append(h)
        y = jnp.stack(ys, 1)
        hiddens.append(h)
        mean = y.mean(axis=(0, 1))
        var = ((y - mean) ** 2).mean(axis=(0, 1))
        out = (y - mean) / jnp.sqrt(var + 1e-4) * p["gamma"] + p["beta"]
    return out, jnp.stack(hiddens, 0)


if __name__ == "__main__":
    BATCH, TIME, INPUT_SIZE, HIDDEN_SIZE, NUM_LAYER = 2, 8, 4, 32, 1

    key = jax.random.PRNGKey(0)
    key, kx = jax.random.split(key)
    x = jax.random.normal(kx, (BATCH, TIME, INPUT_SIZE), jnp.float32)

    raw_params = init_params(key, INPUT_SIZE, HIDDEN_SIZE, NUM_LAYER)
    layer_arrays, hidden_sizes = prep_params(raw_params, INPUT_SIZE)

    output, h_n = basic_indrnn_forward(x, layer_arrays, hidden_sizes=hidden_sizes)
    output = jax.block_until_ready(output)
    h_n = jax.block_until_ready(h_n)

    assert output.shape == (BATCH, TIME, HIDDEN_SIZE)
    assert h_n.shape == (NUM_LAYER, BATCH, HIDDEN_SIZE)
    assert bool(jnp.all(jnp.isfinite(output))) and bool(jnp.all(jnp.isfinite(h_n)))

    # Loose-tolerance sanity check against a pure-JAX reference of the module.
    ref_out, ref_h = _reference_forward(x, raw_params)
    assert float(jnp.max(jnp.abs(output - ref_out))) < 1e-2
    assert float(jnp.max(jnp.abs(h_n - ref_h))) < 1e-3

    print("KERNEL_OK")
</pallas_src>

<mosaic_0001>
module attributes {stable_mosaic.version = 11 : i64} {
  func.func @_indrnn_layer_kernel(%arg0: i32, %arg1: memref<64x4xf32, #tpu.memory_space<vmem>>, %arg2: memref<4x128xf32, #tpu.memory_space<vmem>>, %arg3: memref<4x128xf32, #tpu.memory_space<vmem>>, %arg4: memref<64x128xf32, #tpu.memory_space<vmem>>, %arg5: memref<8x128xf32, #tpu.memory_space<vmem>>, %arg6: memref<64x128xf32, #tpu.memory_space<vmem>>) attributes {dimension_semantics = [#tpu.dimension_semantics<parallel>], iteration_bounds = array<i64: 1>, scalar_prefetch = 0 : i64, scratch_operands = 1 : i64, tpu.core_type = #tpu.core_type<tc>, window_params = [{pipeline_mode = #tpu.pipeline_mode<synchronous>, transform_indices = @transform_0, window_bounds = array<i64: 64, 4>}, {transform_indices = @transform_1, window_bounds = array<i64: 4, 128>}, {transform_indices = @transform_2, window_bounds = array<i64: 4, 128>}, {transform_indices = @transform_3, window_bounds = array<i64: 64, 128>}, {transform_indices = @transform_4, window_bounds = array<i64: 8, 128>}]} {
    %c0 = arith.constant 0 : index
    %c0_0 = arith.constant 0 : index
    %0 = vector.load %arg3[%c0, %c0_0] : memref<4x128xf32, #tpu.memory_space<vmem>>, vector<1x128xf32>
    %c1 = arith.constant 1 : index
    %c0_1 = arith.constant 0 : index
    %1 = vector.load %arg3[%c1, %c0_1] : memref<4x128xf32, #tpu.memory_space<vmem>>, vector<1x128xf32>
    %c2 = arith.constant 2 : index
    %c0_2 = arith.constant 0 : index
    %2 = vector.load %arg3[%c2, %c0_2] : memref<4x128xf32, #tpu.memory_space<vmem>>, vector<1x128xf32>
    %c3 = arith.constant 3 : index
    %c0_3 = arith.constant 0 : index
    %3 = vector.load %arg3[%c3, %c0_3] : memref<4x128xf32, #tpu.memory_space<vmem>>, vector<1x128xf32>
    %c0_4 = arith.constant 0 : index
    %c0_5 = arith.constant 0 : index
    %4 = vector.load %arg1[%c0_4, %c0_5] : memref<64x4xf32, #tpu.memory_space<vmem>>, vector<64x4xf32>
    %c0_6 = arith.constant 0 : index
    %c0_7 = arith.constant 0 : index
    %5 = vector.load %arg2[%c0_6, %c0_7] : memref<4x128xf32, #tpu.memory_space<vmem>>, vector<4x128xf32>
    %cst = arith.constant dense<0.000000e+00> : vector<64x128xf32>
    %6 = tpu.matmul %4, %5, %cst {dimension_numbers = #tpu.dot_dimension_numbers<[1], [0], [0], [1], [0, 0, 1, 1], [], []>} : vector<64x4xf32>, vector<4x128xf32>, vector<64x128xf32> -> vector<64x128xf32>
    %7 = tpu.iota {dimensions = array<i32: 0>} : vector<64x1xi32>
    %c8_i32 = arith.constant 8 : i32
    %c0_i32 = arith.constant 0 : i32
    %8 = arith.cmpi eq, %c8_i32, %c0_i32 : i32
    %c1_i32 = arith.constant 1 : i32
    %9 = arith.select %8, %c1_i32, %c8_i32 : i32
    %10 = vector.broadcast %9 : i32 to vector<64x1xi32>
    %11 = arith.remsi %7, %10 : vector<64x1xi32>
    %c0_i32_8 = arith.constant 0 : i32
    %12 = vector.broadcast %c0_i32_8 : i32 to vector<64x1xi32>
    %13 = arith.cmpi ne, %11, %12 : vector<64x1xi32>
    %c0_i32_9 = arith.constant 0 : i32
    %14 = vector.broadcast %c0_i32_9 : i32 to vector<64x1xi32>
    %15 = arith.cmpi slt, %11, %14 : vector<64x1xi32>
    %c0_i32_10 = arith.constant 0 : i32
    %16 = arith.cmpi slt, %9, %c0_i32_10 : i32
    %17 = vector.broadcast %16 : i1 to vector<64x1xi1>
    %18 = vector.broadcast %17 : vector<64x1xi1> to vector<64x1xi1>
    %19 = arith.xori %15, %18 : vector<64x1xi1>
    %20 = arith.andi %19, %13 : vector<64x1xi1>
    %21 = vector.broadcast %9 : i32 to vector<64x1xi32>
    %22 = arith.addi %11, %21 : vector<64x1xi32>
    %23 = arith.select %20, %22, %11 : vector<64x1xi1>, vector<64x1xi32>
    %c2_i32 = arith.constant 2 : i32
    %24 = vector.broadcast %c2_i32 : i32 to vector<64x1xi32>
    %25 = arith.cmpi slt, %23, %24 : vector<64x1xi32>
    %cst_11 = arith.constant 0.000000e+00 : f32
    %26 = vector.shape_cast %25 : vector<64x1xi1> to vector<64x1xi1>
    %27 = vector.broadcast %26 : vector<64x1xi1> to vector<64x128xi1>
    %28 = vector.shape_cast %0 : vector<1x128xf32> to vector<1x128xf32>
    %29 = vector.broadcast %28 : vector<1x128xf32> to vector<64x128xf32>
    %30 = vector.broadcast %cst_11 : f32 to vector<64x128xf32>
    %31 = arith.select %27, %29, %30 : vector<64x128xi1>, vector<64x128xf32>
    %32 = arith.addf %6, %31 : vector<64x128xf32>
    %c0_12 = arith.constant 0 : index
    %c0_13 = arith.constant 0 : index
    %33 = vector.load %arg6[%c0_12, %c0_13] : memref<64x128xf32, #tpu.memory_space<vmem>>, vector<64x128xf32>
    tpu.vector_store %arg6[%c0_12, %c0_13], %32 {strides = array<i32>} : memref<64x128xf32, #tpu.memory_space<vmem>>, vector<64x128xf32>,
    %cst_14 = arith.constant 0.000000e+00 : f32
    %34 = vector.broadcast %cst_14 : f32 to vector<8x128xf32>
    %c0_i32_15 = arith.constant 0 : i32
    %c8_i32_16 = arith.constant 8 : i32
    %35 = arith.muli %c0_i32_15, %c8_i32_16 : i32
    %36 = tpu.assume_multiple %35, 8 : i32
    %37 = arith.index_cast %36 : i32 to index
    %c0_17 = arith.constant 0 : index
    %38 = vector.load %arg6[%37, %c0_17] : memref<64x128xf32, #tpu.memory_space<vmem>>, vector<8x128xf32>
    %39 = vector.broadcast %1 : vector<1x128xf32> to vector<8x128xf32>
    %40 = arith.mulf %39, %34 : vector<8x128xf32>
    %41 = arith.addf %38, %40 : vector<8x128xf32>
    %cst_18 = arith.constant 0.000000e+00 : f32
    %42 = vector.broadcast %cst_18 : f32 to vector<8x128xf32>
    %43 = arith.maximumf %41, %42 : vector<8x128xf32>
    %44 = arith.index_cast %36 : i32 to index
    %c0_19 = arith.constant 0 : index
    %45 = vector.load %arg6[%44, %c0_19] : memref<64x128xf32, #tpu.memory_space<vmem>>, vector<8x128xf32>
    tpu.vector_store %arg6[%44, %c0_19], %43 {strides = array<i32>} : memref<64x128xf32, #tpu.memory_space<vmem>>, vector<8x128xf32>,
    %46 = arith.addf %34, %43 : vector<8x128xf32>
    %47 = arith.mulf %43, %43 : vector<8x128xf32>
    %48 = arith.addf %34, %47 : vector<8x128xf32>
    %c1_i32_20 = arith.constant 1 : i32
    %c8_i32_21 = arith.constant 8 : i32
    %49 = arith.muli %c1_i32_20, %c8_i32_21 : i32
    %50 = tpu.assume_multiple %49, 8 : i32
    %51 = arith.index_cast %50 : i32 to index
    %c0_22 = arith.constant 0 : index
    %52 = vector.load %arg6[%51, %c0_22] : memref<64x128xf32, #tpu.memory_space<vmem>>, vector<8x128xf32>
    %53 = vector.broadcast %1 : vector<1x128xf32> to vector<8x128xf32>
    %54 = arith.mulf %53, %43 : vector<8x128xf32>
    %55 = arith.addf %52, %54 : vector<8x128xf32>
    %cst_23 = arith.constant 0.000000e+00 : f32
    %56 = vector.broadcast %cst_23 : f32 to vector<8x128xf32>
    %57 = arith.maximumf %55, %56 : vector<8x128xf32>
    %58 = arith.index_cast %50 : i32 to index
    %c0_24 = arith.constant 0 : index
    %59 = vector.load %arg6[%58, %c0_24] : memref<64x128xf32, #tpu.memory_space<vmem>>, vector<8x128xf32>
    tpu.vector_store %arg6[%58, %c0_24], %57 {strides = array<i32>} : memref<64x128xf32, #tpu.memory_space<vmem>>, vector<8x128xf32>,
    %60 = arith.addf %46, %57 : vector<8x128xf32>
    %61 = arith.mulf %57, %57 : vector<8x128xf32>
    %62 = arith.addf %48, %61 : vector<8x128xf32>
    %c2_i32_25 = arith.constant 2 : i32
    %c8_i32_26 = arith.constant 8 : i32
    %63 = arith.muli %c2_i32_25, %c8_i32_26 : i32
    %64 = tpu.assume_multiple %63, 8 : i32
    %65 = arith.index_cast %64 : i32 to index
    %c0_27 = arith.constant 0 : index
    %66 = vector.load %arg6[%65, %c0_27] : memref<64x128xf32, #tpu.memory_space<vmem>>, vector<8x128xf32>
    %67 = vector.broadcast %1 : vector<1x128xf32> to vector<8x128xf32>
    %68 = arith.mulf %67, %57 : vector<8x128xf32>
    %69 = arith.addf %66, %68 : vector<8x128xf32>
    %cst_28 = arith.constant 0.000000e+00 : f32
    %70 = vector.broadcast %cst_28 : f32 to vector<8x128xf32>
    %71 = arith.maximumf %69, %70 : vector<8x128xf32>
    %72 = arith.index_cast %64 : i32 to index
    %c0_29 = arith.constant 0 : index
    %73 = vector.load %arg6[%72, %c0_29] : memref<64x128xf32, #tpu.memory_space<vmem>>, vector<8x128xf32>
    tpu.vector_store %arg6[%72, %c0_29], %71 {strides = array<i32>} : memref<64x128xf32, #tpu.memory_space<vmem>>, vector<8x128xf32>,
    %74 = arith.addf %60, %71 : vector<8x128xf32>
    %75 = arith.mulf %71, %71 : vector<8x128xf32>
    %76 = arith.addf %62, %75 : vector<8x128xf32>
    %c3_i32 = arith.constant 3 : i32
    %c8_i32_30 = arith.constant 8 : i32
    %77 = arith.muli %c3_i32, %c8_i32_30 : i32
    %78 = tpu.assume_multiple %77, 8 : i32
    %79 = arith.index_cast %78 : i32 to index
    %c0_31 = arith.constant 0 : index
    %80 = vector.load %arg6[%79, %c0_31] : memref<64x128xf32, #tpu.memory_space<vmem>>, vector<8x128xf32>
    %81 = vector.broadcast %1 : vector<1x128xf32> to vector<8x128xf32>
    %82 = arith.mulf %81, %71 : vector<8x128xf32>
    %83 = arith.addf %80, %82 : vector<8x128xf32>
    %cst_32 = arith.constant 0.000000e+00 : f32
    %84 = vector.broadcast %cst_32 : f32 to vector<8x128xf32>
    %85 = arith.maximumf %83, %84 : vector<8x128xf32>
    %86 = arith.index_cast %78 : i32 to index
    %c0_33 = arith.constant 0 : index
    %87 = vector.load %arg6[%86, %c0_33] : memref<64x128xf32, #tpu.memory_space<vmem>>, vector<8x128xf32>
    tpu.vector_store %arg6[%86, %c0_33], %85 {strides = array<i32>} : memref<64x128xf32, #tpu.memory_space<vmem>>, vector<8x128xf32>,
    %88 = arith.addf %74, %85 : vector<8x128xf32>
    %89 = arith.mulf %85, %85 : vector<8x128xf32>
    %90 = arith.addf %76, %89 : vector<8x128xf32>
    %c4_i32 = arith.constant 4 : i32
    %c8_i32_34 = arith.constant 8 : i32
    %91 = arith.muli %c4_i32, %c8_i32_34 : i32
    %92 = tpu.assume_multiple %91, 8 : i32
    %93 = arith.index_cast %92 : i32 to index
    %c0_35 = arith.constant 0 : index
    %94 = vector.load %arg6[%93, %c0_35] : memref<64x128xf32, #tpu.memory_space<vmem>>, vector<8x128xf32>
    %95 = vector.broadcast %1 : vector<1x128xf32> to vector<8x128xf32>
    %96 = arith.mulf %95, %85 : vector<8x128xf32>
    %97 = arith.addf %94, %96 : vector<8x128xf32>
    %cst_36 = arith.constant 0.000000e+00 : f32
    %98 = vector.broadcast %cst_36 : f32 to vector<8x128xf32>
    %99 = arith.maximumf %97, %98 : vector<8x128xf32>
    %100 = arith.index_cast %92 : i32 to index
    %c0_37 = arith.constant 0 : index
    %101 = vector.load %arg6[%100, %c0_37] : memref<64x128xf32, #tpu.memory_space<vmem>>, vector<8x128xf32>
    tpu.vector_store %arg6[%100, %c0_37], %99 {strides = array<i32>} : memref<64x128xf32, #tpu.memory_space<vmem>>, vector<8x128xf32>,
    %102 = arith.addf %88, %99 : vector<8x128xf32>
    %103 = arith.mulf %99, %99 : vector<8x128xf32>
    %104 = arith.addf %90, %103 : vector<8x128xf32>
    %c5_i32 = arith.constant 5 : i32
    %c8_i32_38 = arith.constant 8 : i32
    %105 = arith.muli %c5_i32, %c8_i32_38 : i32
    %106 = tpu.assume_multiple %105, 8 : i32
    %107 = arith.index_cast %106 : i32 to index
    %c0_39 = arith.constant 0 : index
    %108 = vector.load %arg6[%107, %c0_39] : memref<64x128xf32, #tpu.memory_space<vmem>>, vector<8x128xf32>
    %109 = vector.broadcast %1 : vector<1x128xf32> to vector<8x128xf32>
    %110 = arith.mulf %109, %99 : vector<8x128xf32>
    %111 = arith.addf %108, %110 : vector<8x128xf32>
    %cst_40 = arith.constant 0.000000e+00 : f32
    %112 = vector.broadcast %cst_40 : f32 to vector<8x128xf32>
    %113 = arith.maximumf %111, %112 : vector<8x128xf32>
    %114 = arith.index_cast %106 : i32 to index
    %c0_41 = arith.constant 0 : index
    %115 = vector.load %arg6[%114, %c0_41] : memref<64x128xf32, #tpu.memory_space<vmem>>, vector<8x128xf32>
    tpu.vector_store %arg6[%114, %c0_41], %113 {strides = array<i32>} : memref<64x128xf32, #tpu.memory_space<vmem>>, vector<8x128xf32>,
    %116 = arith.addf %102, %113 : vector<8x128xf32>
    %117 = arith.mulf %113, %113 : vector<8x128xf32>
    %118 = arith.addf %104, %117 : vector<8x128xf32>
    %c6_i32 = arith.constant 6 : i32
    %c8_i32_42 = arith.constant 8 : i32
    %119 = arith.muli %c6_i32, %c8_i32_42 : i32
    %120 = tpu.assume_multiple %119, 8 : i32
    %121 = arith.index_cast %120 : i32 to index
    %c0_43 = arith.constant 0 : index
    %122 = vector.load %arg6[%121, %c0_43] : memref<64x128xf32, #tpu.memory_space<vmem>>, vector<8x128xf32>
    %123 = vector.broadcast %1 : vector<1x128xf32> to vector<8x128xf32>
    %124 = arith.mulf %123, %113 : vector<8x128xf32>
    %125 = arith.addf %122, %124 : vector<8x128xf32>
    %cst_44 = arith.constant 0.000000e+00 : f32
    %126 = vector.broadcast %cst_44 : f32 to vector<8x128xf32>
    %127 = arith.maximumf %125, %126 : vector<8x128xf32>
    %128 = arith.index_cast %120 : i32 to index
    %c0_45 = arith.constant 0 : index
    %129 = vector.load %arg6[%128, %c0_45] : memref<64x128xf32, #tpu.memory_space<vmem>>, vector<8x128xf32>
    tpu.vector_store %arg6[%128, %c0_45], %127 {strides = array<i32>} : memref<64x128xf32, #tpu.memory_space<vmem>>, vector<8x128xf32>,
    %130 = arith.addf %116, %127 : vector<8x128xf32>
    %131 = arith.mulf %127, %127 : vector<8x128xf32>
    %132 = arith.addf %118, %131 : vector<8x128xf32>
    %c7_i32 = arith.constant 7 : i32
    %c8_i32_46 = arith.constant 8 : i32
    %133 = arith.muli %c7_i32, %c8_i32_46 : i32
    %134 = tpu.assume_multiple %133, 8 : i32
    %135 = arith.index_cast %134 : i32 to index
    %c0_47 = arith.constant 0 : index
    %136 = vector.load %arg6[%135, %c0_47] : memref<64x128xf32, #tpu.memory_space<vmem>>, vector<8x128xf32>
    %137 = vector.broadcast %1 : vector<1x128xf32> to vector<8x128xf32>
    %138 = arith.mulf %137, %127 : vector<8x128xf32>
    %139 = arith.addf %136, %138 : vector<8x128xf32>
    %cst_48 = arith.constant 0.000000e+00 : f32
    %140 = vector.broadcast %cst_48 : f32 to vector<8x128xf32>
    %141 = arith.maximumf %139, %140 : vector<8x128xf32>
    %142 = arith.index_cast %134 : i32 to index
    %c0_49 = arith.constant 0 : index
    %143 = vector.load %arg6[%142, %c0_49] : memref<64x128xf32, #tpu.memory_space<vmem>>, vector<8x128xf32>
    tpu.vector_store %arg6[%142, %c0_49], %141 {strides = array<i32>} : memref<64x128xf32, #tpu.memory_space<vmem>>, vector<8x128xf32>,
    %144 = arith.addf %130, %141 : vector<8x128xf32>
    %145 = arith.mulf %141, %141 : vector<8x128xf32>
    %146 = arith.addf %132, %145 : vector<8x128xf32>
    %c8_i32_50 = arith.constant 8 : i32
    %c0_51 = arith.constant 0 : index
    %c0_52 = arith.constant 0 : index
    %147 = vector.load %arg5[%c0_51, %c0_52] : memref<8x128xf32, #tpu.memory_space<vmem>>, vector<8x128xf32>
    tpu.vector_store %arg5[%c0_51, %c0_52], %141 {strides = array<i32>} : memref<8x128xf32, #tpu.memory_space<vmem>>, vector<8x128xf32>,
    %cst_53 = arith.constant dense<0.000000e+00> : vector<128xf32>
    %148 = vector.multi_reduction <add>, %144, %cst_53 [0] : vector<8x128xf32> to vector<128xf32>
    %149 = vector.shape_cast %148 : vector<128xf32> to vector<1x128xf32>
    %cst_54 = arith.constant dense<0.000000e+00> : vector<128xf32>
    %150 = vector.multi_reduction <add>, %146, %cst_54 [0] : vector<8x128xf32> to vector<128xf32>
    %151 = vector.shape_cast %150 : vector<128xf32> to vector<1x128xf32>
    %cst_55 = arith.constant 6.250000e-02 : f32
    %152 = vector.broadcast %cst_55 : f32 to vector<1x128xf32>
    %153 = arith.mulf %149, %152 : vector<1x128xf32>
    %cst_56 = arith.constant 6.250000e-02 : f32
    %154 = vector.broadcast %cst_56 : f32 to vector<1x128xf32>
    %155 = arith.mulf %151, %154 : vector<1x128xf32>
    %156 = arith.mulf %153, %153 : vector<1x128xf32>
    %157 = arith.subf %155, %156 : vector<1x128xf32>
    %cst_57 = arith.constant 0.000000e+00 : f32
    %158 = vector.broadcast %cst_57 : f32 to vector<1x128xf32>
    %159 = arith.maximumf %157, %158 : vector<1x128xf32>
    %cst_58 = arith.constant 9.99999974E-5 : f32
    %160 = vector.broadcast %cst_58 : f32 to vector<1x128xf32>
    %161 = arith.addf %159, %160 : vector<1x128xf32>
    %162 = math.rsqrt %161 : vector<1x128xf32>
    %163 = arith.mulf %2, %162 : vector<1x128xf32>
    %164 = arith.mulf %153, %163 : vector<1x128xf32>
    %165 = arith.subf %3, %164 : vector<1x128xf32>
    %c0_59 = arith.constant 0 : index
    %c0_60 = arith.constant 0 : index
    %166 = vector.load %arg6[%c0_59, %c0_60] : memref<64x128xf32, #tpu.memory_space<vmem>>, vector<64x128xf32>
    %167 = vector.broadcast %163 : vector<1x128xf32> to vector<64x128xf32>
    %168 = arith.mulf %166, %167 : vector<64x128xf32>
    %169 = vector.broadcast %165 : vector<1x128xf32> to vector<64x128xf32>
    %170 = arith.addf %168, %169 : vector<64x128xf32>
    %c0_61 = arith.constant 0 : index
    %c0_62 = arith.constant 0 : index
    %171 = vector.load %arg4[%c0_61, %c0_62] : memref<64x128xf32, #tpu.memory_space<vmem>>, vector<64x128xf32>
    tpu.vector_store %arg4[%c0_61, %c0_62], %170 {strides = array<i32>} : memref<64x128xf32, #tpu.memory_space<vmem>>, vector<64x128xf32>,
    return
  }
  func.func @transform_0(%arg0: i32) -> (i32, i32) {
    %c0_i32 = arith.constant 0 : i32
    %c0_i32_0 = arith.constant 0 : i32
    %c0_i32_1 = arith.constant 0 : i32
    return %c0_i32, %c0_i32_0 : i32, i32
  }
  func.func @transform_1(%arg0: i32) -> (i32, i32) {
    %c0_i32 = arith.constant 0 : i32
    %c0_i32_0 = arith.constant 0 : i32
    return %c0_i32, %arg0 : i32, i32
  }
  func.func @transform_2(%arg0: i32) -> (i32, i32) {
    %c0_i32 = arith.constant 0 : i32
    %c0_i32_0 = arith.constant 0 : i32
    return %c0_i32, %arg0 : i32, i32
  }
  func.func @transform_3(%arg0: i32) -> (i32, i32) {
    %c0_i32 = arith.constant 0 : i32
    %c0_i32_0 = arith.constant 0 : i32
    return %c0_i32, %arg0 : i32, i32
  }
  func.func @transform_4(%arg0: i32) -> (i32, i32) {
    %c0_i32 = arith.constant 0 : i32
    %c0_i32_0 = arith.constant 0 : i32
    return %c0_i32, %arg0 : i32, i32
  }
}

</mosaic_0001>

<llo_original>
// kernel: basic_indrnn_forward.1
$region0: #{basic_indrnn_forward.1}
  #allocation0 [shape = 'u32[]', space=smem, size = 0x4, offset = 0x4, fixed_abs, tag = 'smem constant byte address 0x4 - core index']
  #allocation1 [shape = 'u32[144,128]{1,0:T(1,128)}', space=vmem, size = 0x12000, scoped, tag = 'internal scratch']
  #allocation2 [shape = 'f32[64,128]{1,0:T(8,128)}', space=vmem, size = 0x8000, scoped, tag = 'scratch operand']
  %s0 = inlined_call_operand.vmem [shape: f32[64,4], index: 0, kind: input, shape index: {}]
  %s1 = inlined_call_operand.vmem [shape: f32[4,128], index: 1, kind: input, shape index: {}]
  %s2 = inlined_call_operand.vmem [shape: f32[4,128], index: 2, kind: input, shape index: {}]
  %s3 = inlined_call_operand.vmem [shape: f32[64,128], index: 3, kind: output, shape index: {0}]
  %s4 = inlined_call_operand.vmem [shape: f32[8,128], index: 4, kind: output, shape index: {1}]
  %5 = xla_tuple %s3, %s4
  %s6 = sld [smem:[#allocation0]]
  $region30: #{basic_indrnn_forward.1} parent=0
    _
  %s8 = ssub.s32 1, %s6
  %s9 = scalar_select 0, %s8, %s6
  // Predicated region
  $region2: #{basic_indrnn_forward.1} parent=0 // pred_check
    _
  $region3: #{basic_indrnn_forward.1} parent=0 // pred_check_branch
    %11 = sbr.rel (0) target = $region5
  $region4: #{basic_indrnn_forward.1} parent=0 // pred_region
    _
  $region5: #{basic_indrnn_forward.1} parent=0 // pred_fallthru
    _
  // Predicated region
  $region6: #{basic_indrnn_forward.1} parent=0 // pred_check
    _
  $region7: #{basic_indrnn_forward.1} parent=0 // pred_check_branch
    %13 = sbr.rel (0) target = $region9
  $region8: #{basic_indrnn_forward.1} parent=0 // pred_region
    _
  $region9: #{basic_indrnn_forward.1} parent=0 // pred_fallthru
    _
  // Predicated region
  $region10: #{basic_indrnn_forward.1} parent=0 // pred_check
    _
  $region11: #{basic_indrnn_forward.1} parent=0 // pred_check_branch
    %15 = sbr.rel (0) target = $region13
  $region12: #{basic_indrnn_forward.1} parent=0 // pred_region
    _
  $region13: #{basic_indrnn_forward.1} parent=0 // pred_fallthru
    _
  %v16 = vld [vmem:[%s2] sm:$0x1]
  %v17 = vld [vmem:[%s2 + $0x1] sm:$0x1]
  %v18 = vld [vmem:[%s2 + $0x2] sm:$0x1]
  %v19 = vld [vmem:[%s2 + $0x3] sm:$0x1]
  %v20 = vld [vmem:[%s0] sm:$0xff]
  %v21 = vld [vmem:[%s0 + $0x8] sm:$0xff]
  %v22 = vld [vmem:[%s0 + $0x10] sm:$0xff]
  %v23 = vld [vmem:[%s0 + $0x18] sm:$0xff]
  %v24 = vld [vmem:[%s0 + $0x20] sm:$0xff]
  %v25 = vld [vmem:[%s0 + $0x28] sm:$0xff]
  %v26 = vld [vmem:[%s0 + $0x30] sm:$0xff]
  %v27 = vld [vmem:[%s0 + $0x38] sm:$0xff]
  %v28 = vld [vmem:[%s1] sm:$0xf]
  %v29 = vlaneseq
  %v30 = vshrl.u32 %v29, 7
  %v31 = vadd.s32 %v30, 8
  %v32 = vadd.s32 %v30, 16
  %v33 = vadd.s32 %v30, 24
  %v34 = vadd.s32 %v30, 32
  %v35 = vadd.s32 %v30, 40
  %v36 = vadd.s32 %v30, 48
  %v37 = vadd.s32 %v30, 56
  %vm38 = vcmp.lt.s32.totalorder %v30, 0
  %v39 = vsub.s32 0, %v30
  %v40 = vsel %vm38, %v39, %v30
  %v41 = vshrl.u32 %v40, 3
  %v42 = vand.u32 %v40, 7
  %v43 = vsub.s32 0, %v42
  %v44 = vsel %vm38, %v43, %v42
  %vm45 = vcmp.lt.s32.totalorder %v31, 0
  %v46 = vsub.s32 0, %v31
  %v47 = vsel %vm45, %v46, %v31
  %v48 = vshrl.u32 %v47, 3
  %v49 = vand.u32 %v47, 7
  %v50 = vsub.s32 0, %v49
  %v51 = vsel %vm45, %v50, %v49
  %vm52 = vcmp.lt.s32.totalorder %v32, 0
  %v53 = vsub.s32 0, %v32
  %v54 = vsel %vm52, %v53, %v32
  %v55 = vshrl.u32 %v54, 3
  %v56 = vand.u32 %v54, 7
  %v57 = vsub.s32 0, %v56
  %v58 = vsel %vm52, %v57, %v56
  %vm59 = vcmp.lt.s32.totalorder %v33, 0
  %v60 = vsub.s32 0, %v33
  %v61 = vsel %vm59, %v60, %v33
  %v62 = vshrl.u32 %v61, 3
  %v63 = vand.u32 %v61, 7
  %v64 = vsub.s32 0, %v63
  %v65 = vsel %vm59, %v64, %v63
  %vm66 = vcmp.lt.s32.totalorder %v34, 0
  %v67 = vsub.s32 0, %v34
  %v68 = vsel %vm66, %v67, %v34
  %v69 = vshrl.u32 %v68, 3
  %v70 = vand.u32 %v68, 7
  %v71 = vsub.s32 0, %v70
  %v72 = vsel %vm66, %v71, %v70
  %vm73 = vcmp.lt.s32.totalorder %v35, 0
  %v74 = vsub.s32 0, %v35
  %v75 = vsel %vm73, %v74, %v35
  %v76 = vshrl.u32 %v75, 3
  %v77 = vand.u32 %v75, 7
  %v78 = vsub.s32 0, %v77
  %v79 = vsel %vm73, %v78, %v77
  %vm80 = vcmp.lt.s32.totalorder %v36, 0
  %v81 = vsub.s32 0, %v36
  %v82 = vsel %vm80, %v81, %v36
  %v83 = vshrl.u32 %v82, 3
  %v84 = vand.u32 %v82, 7
  %v85 = vsub.s32 0, %v84
  %v86 = vsel %vm80, %v85, %v84
  %vm87 = vcmp.lt.s32.totalorder %v37, 0
  %v88 = vsub.s32 0, %v37
  %v89 = vsel %vm87, %v88, %v37
  %v90 = vshrl.u32 %v89, 3
  %v91 = vand.u32 %v89, 7
  %v92 = vsub.s32 0, %v91
  %v93 = vsel %vm87, %v92, %v91
  %vm94 = vcmp.ne.s32.totalorder %v44, 0
  %vm95 = vcmp.ne.s32.totalorder %v51, 0
  %vm96 = vcmp.ne.s32.totalorder %v58, 0
  %vm97 = vcmp.ne.s32.totalorder %v65, 0
  %vm98 = vcmp.ne.s32.totalorder %v72, 0
  %vm99 = vcmp.ne.s32.totalorder %v79, 0
  %vm100 = vcmp.ne.s32.totalorder %v86, 0
  %vm101 = vcmp.ne.s32.totalorder %v93, 0
  %vm102 = vcmp.lt.s32.totalorder %v44, 0
  %vm103 = vcmp.lt.s32.totalorder %v51, 0
  %vm104 = vcmp.lt.s32.totalorder %v58, 0
  %vm105 = vcmp.lt.s32.totalorder %v65, 0
  %vm106 = vcmp.lt.s32.totalorder %v72, 0
  %vm107 = vcmp.lt.s32.totalorder %v79, 0
  %vm108 = vcmp.lt.s32.totalorder %v86, 0
  %vm109 = vcmp.lt.s32.totalorder %v93, 0
  %vm110 = vmand %vm102, %vm94
  %vm111 = vmand %vm103, %vm95
  %vm112 = vmand %vm104, %vm96
  %vm113 = vmand %vm105, %vm97
  %vm114 = vmand %vm106, %vm98
  %vm115 = vmand %vm107, %vm99
  %vm116 = vmand %vm108, %vm100
  %vm117 = vmand %vm109, %vm101
  %v118 = vadd.s32 %v44, 8
  %v119 = vadd.s32 %v51, 8
  %v120 = vadd.s32 %v58, 8
  %v121 = vadd.s32 %v65, 8
  %v122 = vadd.s32 %v72, 8
  %v123 = vadd.s32 %v79, 8
  %v124 = vadd.s32 %v86, 8
  %v125 = vadd.s32 %v93, 8
  %v126 = vsel %vm110, %v118, %v44
  %v127 = vsel %vm111, %v119, %v51
  %v128 = vsel %vm112, %v120, %v58
  %v129 = vsel %vm113, %v121, %v65
  %v130 = vsel %vm114, %v122, %v72
  %v131 = vsel %vm115, %v123, %v79
  %v132 = vsel %vm116, %v124, %v86
  %v133 = vsel %vm117, %v125, %v93
  %vm134 = vcmp.lt.s32.totalorder %v126, 2
  %vm135 = vcmp.lt.s32.totalorder %v127, 2
  %vm136 = vcmp.lt.s32.totalorder %v128, 2
  %vm137 = vcmp.lt.s32.totalorder %v129, 2
  %vm138 = vcmp.lt.s32.totalorder %v130, 2
  %vm139 = vcmp.lt.s32.totalorder %v131, 2
  %vm140 = vcmp.lt.s32.totalorder %v132, 2
  %vm141 = vcmp.lt.s32.totalorder %v133, 2
  %v142 = vsel %vm134, 1, 0
  %v143 = vsel %vm135, 1, 0
  %v144 = vsel %vm136, 1, 0
  %v145 = vsel %vm137, 1, 0
  %v146 = vsel %vm138, 1, 0
  %v147 = vsel %vm139, 1, 0
  %v148 = vsel %vm140, 1, 0
  %v149 = vsel %vm141, 1, 0
  %vm150 = vcmp.eq.s32.totalorder %v142, 1
  %vm151 = vcmp.eq.s32.totalorder %v143, 1
  %vm152 = vcmp.eq.s32.totalorder %v144, 1
  %vm153 = vcmp.eq.s32.totalorder %v145, 1
  %vm154 = vcmp.eq.s32.totalorder %v146, 1
  %vm155 = vcmp.eq.s32.totalorder %v147, 1
  %vm156 = vcmp.eq.s32.totalorder %v148, 1
  %vm157 = vcmp.eq.s32.totalorder %v149, 1
  %v158 = vlaneseq
  %v159 = vshrl.u32 %v158, 7
  %v160 = vsub.s32 0, %v159
  %v161 = vrot.slane %v16, %v160
  %v162 = vsel %vm150, %v161, 0.0
  %v163 = vsel %vm151, %v161, 0.0
  %v164 = vsel %vm152, %v161, 0.0
  %v165 = vsel %vm153, %v161, 0.0
  %v166 = vsel %vm154, %v161, 0.0
  %v167 = vsel %vm155, %v161, 0.0
  %v168 = vsel %vm156, %v161, 0.0
  %v169 = vsel %vm157, %v161, 0.0
  %vm170 = vcmask 31744
  %v172 = vsel %vm170, %v20, 0
  %v175 = vsel %vm170, %v21, 0
  %v178 = vsel %vm170, %v22, 0
  %v181 = vsel %vm170, %v23, 0
  %v184 = vsel %vm170, %v24, 0
  %v187 = vsel %vm170, %v25, 0
  %v190 = vsel %vm170, %v26, 0
  %v193 = vsel %vm170, %v27, 0
  %vm195 = vcmask 1043456
  %v197 = vsel %vm195, %v28, 0
  %199 = vmatprep.subr.mxu0 0.0
  %200 = vmatpush1.msra.mxu0 %v197
  %201 = vmatprep.subr.mxu0 0.0
  %202 = vmatpush1.msra.mxu0 0.0
  %203 = vmatprep.subr.mxu0 0.0
  %204 = vmatpush1.msra.mxu0 0.0
  %205 = vmatprep.subr.mxu0 0.0
  %206 = vmatpush1.msra.mxu0 0.0
  %207 = vmatprep.subr.mxu0 0.0
  %208 = vmatpush1.msra.mxu0 0.0
  %209 = vmatprep.subr.mxu0 0.0
  %210 = vmatpush1.msra.mxu0 0.0
  %211 = vmatprep.subr.mxu0 0.0
  %212 = vmatpush1.msra.mxu0 0.0
  %213 = vmatprep.subr.mxu0 0.0
  %214 = vmatpush1.msra.mxu0 0.0
  %215 = vmatprep.subr.mxu0 0.0
  %216 = vmatpush1.msra.mxu0 0.0
  %217 = vmatprep.subr.mxu0 0.0
  %218 = vmatpush1.msra.mxu0 0.0
  %219 = vmatprep.subr.mxu0 0.0
  %220 = vmatpush1.msra.mxu0 0.0
  %221 = vmatprep.subr.mxu0 0.0
  %222 = vmatpush1.msra.mxu0 0.0
  %223 = vmatprep.subr.mxu0 0.0
  %224 = vmatpush1.msra.mxu0 0.0
  %225 = vmatprep.subr.mxu0 0.0
  %226 = vmatpush1.msra.mxu0 0.0
  %227 = vmatprep.subr.mxu0 0.0
  %228 = vmatpush1.msra.mxu0 0.0
  %229 = vmatprep.subr.mxu0 0.0
  %230 = vmatpush1.msra.mxu0 0.0
  %231 = vmatprep.subr.mxu0 0.0
  %232 = vmatpush1.msra.mxu0 0.0
  %233 = vmatprep.subr.mxu0 0.0
  %234 = vmatpush1.msra.mxu0 0.0
  %235 = vmatprep.subr.mxu0 0.0
  %236 = vmatpush1.msra.mxu0 0.0
  %237 = vmatprep.subr.mxu0 0.0
  %238 = vmatpush1.msra.mxu0 0.0
  %239 = vmatprep.subr.mxu0 0.0
  %240 = vmatpush1.msra.mxu0 0.0
  %241 = vmatprep.subr.mxu0 0.0
  %242 = vmatpush1.msra.mxu0 0.0
  %243 = vmatprep.subr.mxu0 0.0
  %244 = vmatpush1.msra.mxu0 0.0
  %245 = vmatprep.subr.mxu0 0.0
  %246 = vmatpush1.msra.mxu0 0.0
  %247 = vmatprep.subr.mxu0 0.0
  %248 = vmatpush1.msra.mxu0 0.0
  %249 = vmatprep.subr.mxu0 0.0
  %250 = vmatpush1.msra.mxu0 0.0
  %251 = vmatprep.subr.mxu0 0.0
  %252 = vmatpush1.msra.mxu0 0.0
  %253 = vmatprep.subr.mxu0 0.0
  %254 = vmatpush1.msra.mxu0 0.0
  %255 = vmatprep.subr.mxu0 0.0
  %256 = vmatpush1.msra.mxu0 0.0
  %257 = vmatprep.subr.mxu0 0.0
  %258 = vmatpush1.msra.mxu0 0.0
  %259 = vmatprep.subr.mxu0 0.0
  %260 = vmatpush1.msra.mxu0 0.0
  %261 = vmatprep.subr.mxu0 0.0
  %262 = vmatpush1.msra.mxu0 0.0
  %263 = vmatprep.mubr.f32.mxu0 0.0
  %264 = vmatmul.mubr.f32.gmra.mrb[0].mxu0 %v172
  %v265 = vpop.f32.mrb[0].mxu0
  %v266 = vadd.f32 %v162, %v265
  %v267 = vpop.f32.mrb[0].mxu0
  %268 = vmatprep.mubr.f32.mxu0 0.0
  %269 = vmatmul.mubr.f32.gmra.mrb[0].mxu0 %v175
  %v270 = vpop.f32.mrb[0].mxu0
  %v271 = vadd.f32 %v163, %v270
  %v272 = vpop.f32.mrb[0].mxu0
  %273 = vmatprep.mubr.f32.mxu0 0.0
  %274 = vmatmul.mubr.f32.gmra.mrb[0].mxu0 %v178
  %v275 = vpop.f32.mrb[0].mxu0
  %v276 = vadd.f32 %v164, %v275
  %v277 = vpop.f32.mrb[0].mxu0
  %278 = vmatprep.mubr.f32.mxu0 0.0
  %279 = vmatmul.mubr.f32.gmra.mrb[0].mxu0 %v181
  %v280 = vpop.f32.mrb[0].mxu0
  %v281 = vadd.f32 %v165, %v280
  %v282 = vpop.f32.mrb[0].mxu0
  %283 = vmatprep.mubr.f32.mxu0 0.0
  %284 = vmatmul.mubr.f32.gmra.mrb[0].mxu0 %v184
  %v285 = vpop.f32.mrb[0].mxu0
  %v286 = vadd.f32 %v166, %v285
  %v287 = vpop.f32.mrb[0].mxu0
  %288 = vmatprep.mubr.f32.mxu0 0.0
  %289 = vmatmul.mubr.f32.gmra.mrb[0].mxu0 %v187
  %v290 = vpop.f32.mrb[0].mxu0
  %v291 = vadd.f32 %v167, %v290
  %v292 = vpop.f32.mrb[0].mxu0
  %293 = vmatprep.mubr.f32.mxu0 0.0
  %294 = vmatmul.mubr.f32.gmra.mrb[0].mxu0 %v190
  %v295 = vpop.f32.mrb[0].mxu0
  %v296 = vadd.f32 %v168, %v295
  %v297 = vpop.f32.mrb[0].mxu0
  %298 = vmatprep.mubr.f32.mxu0 0.0
  %299 = vmatmul.mubr.f32.gmra.mrb[0].mxu0 %v193
  %v300 = vpop.f32.mrb[0].mxu0
  %v301 = vadd.f32 %v169, %v300
  %v302 = vpop.f32.mrb[0].mxu0
  %303 = vdwg.mxu0
  %304 = vst [vmem:[#allocation2] sm:$0xff] %v266
  %305 = vst [vmem:[#allocation2 + $0x8] sm:$0xff] %v271
  %306 = vst [vmem:[#allocation2 + $0x10] sm:$0xff] %v276
  %307 = vst [vmem:[#allocation2 + $0x18] sm:$0xff] %v281
  %308 = vst [vmem:[#allocation2 + $0x20] sm:$0xff] %v286
  %309 = vst [vmem:[#allocation2 + $0x28] sm:$0xff] %v291
  %310 = vst [vmem:[#allocation2 + $0x30] sm:$0xff] %v296
  %311 = vst [vmem:[#allocation2 + $0x38] sm:$0xff] %v301
  %v312 = vld [vmem:[#allocation2] sm:$0xff]
  %v313 = vlaneseq
  %v314 = vshrl.u32 %v313, 7
  %v315 = vsub.s32 0, %v314
  %v316 = vrot.slane %v17, %v315
  %v317 = vmul.f32 %v316, 0.0
  %v318 = vadd.f32 %v312, %v317
  %v319 = vmax.f32 %v318, 0.0
  %320 = vst [vmem:[#allocation2] sm:$0xff] %v319
  %v321 = vadd.f32 %v319, 0.0
  %v322 = vmul.f32 %v319, %v319
  %v323 = vadd.f32 %v322, 0.0
  %s324 = scalar_lea.vmem [#allocation2], 8
  %v325 = vld [vmem:[%s324] sm:$0xff]
  %v326 = vmul.f32 %v316, %v319
  %v327 = vadd.f32 %v325, %v326
  %v328 = vmax.f32 %v327, 0.0
  %329 = vst [vmem:[%s324] sm:$0xff] %v328
  %v330 = vadd.f32 %v321, %v328
  %v331 = vmul.f32 %v328, %v328
  %v332 = vadd.f32 %v323, %v331
  %s333 = scalar_lea.vmem [#allocation2], 16
  %v334 = vld [vmem:[%s333] sm:$0xff]
  %v335 = vmul.f32 %v316, %v328
  %v336 = vadd.f32 %v334, %v335
  %v337 = vmax.f32 %v336, 0.0
  %338 = vst [vmem:[%s333] sm:$0xff] %v337
  %v339 = vadd.f32 %v330, %v337
  %v340 = vmul.f32 %v337, %v337
  %v341 = vadd.f32 %v332, %v340
  %s342 = scalar_lea.vmem [#allocation2], 24
  %v343 = vld [vmem:[%s342] sm:$0xff]
  %v344 = vmul.f32 %v316, %v337
  %v345 = vadd.f32 %v343, %v344
  %v346 = vmax.f32 %v345, 0.0
  %347 = vst [vmem:[%s342] sm:$0xff] %v346
  %v348 = vadd.f32 %v339, %v346
  %v349 = vmul.f32 %v346, %v346
  %v350 = vadd.f32 %v341, %v349
  %s351 = scalar_lea.vmem [#allocation2], 32
  %v352 = vld [vmem:[%s351] sm:$0xff]
  %v353 = vmul.f32 %v316, %v346
  %v354 = vadd.f32 %v352, %v353
  %v355 = vmax.f32 %v354, 0.0
  %356 = vst [vmem:[%s351] sm:$0xff] %v355
  %v357 = vadd.f32 %v348, %v355
  %v358 = vmul.f32 %v355, %v355
  %v359 = vadd.f32 %v350, %v358
  %s360 = scalar_lea.vmem [#allocation2], 40
  %v361 = vld [vmem:[%s360] sm:$0xff]
  %v362 = vmul.f32 %v316, %v355
  %v363 = vadd.f32 %v361, %v362
  %v364 = vmax.f32 %v363, 0.0
  %365 = vst [vmem:[%s360] sm:$0xff] %v364
  %v366 = vadd.f32 %v357, %v364
  %v367 = vmul.f32 %v364, %v364
  %v368 = vadd.f32 %v359, %v367
  %s369 = scalar_lea.vmem [#allocation2], 48
  %v370 = vld [vmem:[%s369] sm:$0xff]
  %v371 = vmul.f32 %v316, %v364
  %v372 = vadd.f32 %v370, %v371
  %v373 = vmax.f32 %v372, 0.0
  %374 = vst [vmem:[%s369] sm:$0xff] %v373
  %v375 = vadd.f32 %v366, %v373
  %v376 = vmul.f32 %v373, %v373
  %v377 = vadd.f32 %v368, %v376
  %s378 = scalar_lea.vmem [#allocation2], 56
  %v379 = vld [vmem:[%s378] sm:$0xff]
  %v380 = vmul.f32 %v316, %v373
  %v381 = vadd.f32 %v379, %v380
  %v382 = vmax.f32 %v381, 0.0
  %383 = vst [vmem:[%s378] sm:$0xff] %v382
  %v384 = vadd.f32 %v375, %v382
  %v385 = vmul.f32 %v382, %v382
  %v386 = vadd.f32 %v377, %v385
  %387 = vst [vmem:[%s4] sm:$0xff] %v382
  %v388 = vrot.slane %v384, 4
  %v389 = vadd.f32 %v384, %v388
  %v390 = vrot.slane %v389, 2
  %v391 = vadd.f32 %v389, %v390
  %v392 = vrot.slane %v391, 1
  %v393 = vadd.f32 %v391, %v392
  %v394 = vrot.slane %v386, 4
  %v395 = vadd.f32 %v386, %v394
  %v396 = vrot.slane %v395, 2
  %v397 = vadd.f32 %v395, %v396
  %v398 = vrot.slane %v397, 1
  %v399 = vadd.f32 %v397, %v398
  %v400 = vmul.f32 %v393, 0.0625
  %v401 = vmul.f32 %v399, 0.0625
  %v402 = vmul.f32 %v400, %v400
  %v403 = vsub.f32 %v401, %v402
  %v404 = vmax.f32 %v403, 0.0
  %v405 = vadd.f32 %v404, 0.0001
  %v406 = vrsqrt.pop %v405
  %v407 = vmul.f32 %v18, %v406
  %v408 = vmul.f32 %v400, %v407
  %v409 = vsub.f32 %v19, %v408
  %v410 = vld [vmem:[#allocation2] sm:$0xff]
  %v411 = vld [vmem:[#allocation2 + $0x8] sm:$0xff]
  %v412 = vld [vmem:[#allocation2 + $0x10] sm:$0xff]
  %v413 = vld [vmem:[#allocation2 + $0x18] sm:$0xff]
  %v414 = vld [vmem:[#allocation2 + $0x20] sm:$0xff]
  %v415 = vld [vmem:[#allocation2 + $0x28] sm:$0xff]
  %v416 = vld [vmem:[#allocation2 + $0x30] sm:$0xff]
  %v417 = vld [vmem:[#allocation2 + $0x38] sm:$0xff]
  %v418 = vlaneseq
  %v419 = vshrl.u32 %v418, 7
  %v420 = vsub.s32 0, %v419
  %v421 = vrot.slane %v407, %v420
  %v422 = vmul.f32 %v410, %v421
  %v423 = vmul.f32 %v411, %v421
  %v424 = vmul.f32 %v412, %v421
  %v425 = vmul.f32 %v413, %v421
  %v426 = vmul.f32 %v414, %v421
  %v427 = vmul.f32 %v415, %v421
  %v428 = vmul.f32 %v416, %v421
  %v429 = vmul.f32 %v417, %v421
  %v430 = vlaneseq
  %v431 = vshrl.u32 %v430, 7
  %v432 = vsub.s32 0, %v431
  %v433 = vrot.slane %v409, %v432
  %v434 = vadd.f32 %v422, %v433
  %v435 = vadd.f32 %v423, %v433
  %v436 = vadd.f32 %v424, %v433
  %v437 = vadd.f32 %v425, %v433
  %v438 = vadd.f32 %v426, %v433
  %v439 = vadd.f32 %v427, %v433
  %v440 = vadd.f32 %v428, %v433
  %v441 = vadd.f32 %v429, %v433
  %442 = vst [vmem:[%s3] sm:$0xff] %v434
  %443 = vst [vmem:[%s3 + $0x8] sm:$0xff] %v435
  %444 = vst [vmem:[%s3 + $0x10] sm:$0xff] %v436
  %445 = vst [vmem:[%s3 + $0x18] sm:$0xff] %v437
  %446 = vst [vmem:[%s3 + $0x20] sm:$0xff] %v438
  %447 = vst [vmem:[%s3 + $0x28] sm:$0xff] %v439
  %448 = vst [vmem:[%s3 + $0x30] sm:$0xff] %v440
  %449 = vst [vmem:[%s3 + $0x38] sm:$0xff] %v441
  // Predicated region
  $region14: #{basic_indrnn_forward.1} parent=0 // pred_check
    _
  $region15: #{basic_indrnn_forward.1} parent=0 // pred_check_branch
    %451 = sbr.rel (0) target = $region17
  $region16: #{basic_indrnn_forward.1} parent=0 // pred_region
    _
  $region17: #{basic_indrnn_forward.1} parent=0 // pred_fallthru
    _
  // Predicated region
  $region18: #{basic_indrnn_forward.1} parent=0 // pred_check
    _
  $region19: #{basic_indrnn_forward.1} parent=0 // pred_check_branch
    %453 = sbr.rel (0) target = $region21
  $region20: #{basic_indrnn_forward.1} parent=0 // pred_region
    _
  $region21: #{basic_indrnn_forward.1} parent=0 // pred_fallthru
    _
  // Predicated region
  $region22: #{basic_indrnn_forward.1} parent=0 // pred_check
    _
  $region23: #{basic_indrnn_forward.1} parent=0 // pred_check_branch
    %455 = sbr.rel (0) target = $region25
  $region24: #{basic_indrnn_forward.1} parent=0 // pred_region
    _
  $region25: #{basic_indrnn_forward.1} parent=0 // pred_fallthru
    _
  // Predicated region
  $region26: #{basic_indrnn_forward.1} parent=0 // pred_check
    _
  $region27: #{basic_indrnn_forward.1} parent=0 // pred_check_branch
    %457 = sbr.rel (0) target = $region29
  $region28: #{basic_indrnn_forward.1} parent=0 // pred_region
    _
  $region29: #{basic_indrnn_forward.1} parent=0 // pred_fallthru
    _

</llo_original>
